<compile_context>
chip_gen: v6e
topology: v6e:2x2x1
jax: 0.10.0
libtpu: 0.0.40
codegen_flags: <defaults>
</compile_context>

<pallas_src>
import functools

import jax
import jax.numpy as jnp
from jax import lax
from jax.experimental import pallas as pl
from jax.experimental.pallas import tpu as pltpu


def _round_up(x, m):
    return ((x + m - 1) // m) * m


def _angle_loss_kernel(scale_ref, cos_t_ref, phi_t_ref, cos_ref, out_ref,
                       m_scr, l_scr, *, num_classes, mask_cols):
    """Online log-sum-exp over class tiles of raw cos_theta; margin fix at finalize.

    scale_ref : (1, 1) f32 in SMEM   -- 1 / (1 + lamb), passed as data
    cos_t_ref : (Bt, 1) f32 in VMEM  -- cos_theta[i, target[i]]
    phi_t_ref : (Bt, 1) f32 in VMEM  -- phi_theta[i, target[i]]
    cos_ref   : (Bt, Ct) in VMEM     -- streamed cos_theta tile (f32 or bf16)
    out_ref   : (Bt, 1) f32 in VMEM  -- per-row -log p(target), written at last k
    m_scr/l_scr : (Bt, 1) f32        -- running max / running exp-sum
    """
    k = pl.program_id(1)
    n_k = pl.num_programs(1)

    @pl.when(k == 0)
    def _():
        m_scr[...] = jnp.full(m_scr.shape, -jnp.inf, jnp.float32)
        l_scr[...] = jnp.zeros(l_scr.shape, jnp.float32)

    cos = cos_ref[...].astype(jnp.float32)
    bt, ct = cos.shape

    if mask_cols:
        # Only the last class tile has padded columns; for full tiles the compare is
        # redundant but cheap (the kernel is HBM-bound on v5e/v6e).
        col = lax.broadcasted_iota(jnp.int32, (bt, ct), 1) + k * ct
        cos = jnp.where(col < num_classes, cos, -jnp.inf)

    # Online softmax (LSE) accumulation over the class (reduction) axis.
    m_prev = m_scr[...]
    m_new = jnp.maximum(m_prev, jnp.max(cos, axis=1, keepdims=True))
    alpha = jnp.exp(m_prev - m_new)
    l_scr[...] = alpha * l_scr[...] + jnp.sum(jnp.exp(cos - m_new),
                                              axis=1, keepdims=True)
    m_scr[...] = m_new

    @pl.when(k == n_k - 1)
    def _():
        scale = scale_ref[0, 0]
        cos_t = cos_t_ref[...].astype(jnp.float32)
        phi_t = phi_t_ref[...].astype(jnp.float32)
        # output[i, t] = cos_t - cos_t/(1+lamb) + phi_t/(1+lamb)
        adj_t = cos_t + scale * (phi_t - cos_t)
        m = m_scr[...]
        # Swap the raw target term of the exp-sum for the adjusted one.  All f32; adding
        # exp(adj_t - m) back before the log keeps the argument away from catastrophic
        # cancellation, and the floor guards the pathological underflow case.
        l_adj = l_scr[...] - jnp.exp(cos_t - m) + jnp.exp(adj_t - m)
        l_adj = jnp.maximum(l_adj, jnp.finfo(jnp.float32).tiny)
        out_ref[...] = m + jnp.log(l_adj) - adj_t   # = -log softmax(output)[i, target_i]


@functools.partial(jax.jit, static_argnames=("block_b", "block_c"))
def _angle_loss_pallas(scale, cos_theta, phi_theta, target2d, *,
                       block_b=256, block_c=8192):
    B, C = cos_theta.shape
    itemsize = jnp.dtype(cos_theta.dtype).itemsize

    # Only B of phi_theta's (and cos_theta's) B*C values feed the margin correction ->
    # gather them with a tiny XLA gather instead of streaming phi_theta through VMEM.
    cos_t = jnp.take_along_axis(cos_theta, target2d, axis=1).astype(jnp.float32)
    phi_t = jnp.take_along_axis(phi_theta, target2d, axis=1).astype(jnp.float32)

    # Batch tile: multiple of 8 (16 for sub-32-bit dtypes, sublane packing) or full B.
    # Aim for >= 2 batch tiles so the "parallel" axis can shard across v7x's 2 TCs.
    sub = 8 if itemsize >= 4 else 16
    if B <= sub:
        Bt = B
    else:
        half = _round_up(pl.cdiv(B, 2), sub)
        Bt = min(_round_up(min(block_b, B), sub), half)
        if Bt >= B:
            Bt = B
    # Class tile: multiple of 128 or full C.
    Ct = C if C <= block_c else block_c
    grid = (pl.cdiv(B, Bt), pl.cdiv(C, Ct))

    # Double-buffered streamed cos tile + headroom; clamp to 48 MiB (v7x has 64 MiB
    # physical VMEM) and raise above v5e's 16 MiB scoped default.
    streamed = 2 * Bt * Ct * itemsize
    vmem_limit = int(min(max(2 * streamed, 32 << 20), 48 << 20))

    kernel = functools.partial(_angle_loss_kernel,
                               num_classes=C,
                               mask_cols=(C % Ct) != 0)

    cost = pl.CostEstimate(
        flops=4 * B * C,
        transcendentals=B * C,
        bytes_accessed=B * C * itemsize + 24 * B + 4,
    )

    per_row = pl.pallas_call(
        kernel,
        out_shape=jax.ShapeDtypeStruct((B, 1), jnp.float32),
        grid=grid,
        in_specs=[
            pl.BlockSpec(memory_space=pltpu.MemorySpace.SMEM),   # scale (1,1) f32
            pl.BlockSpec((Bt, 1), lambda b, k: (b, 0)),          # cos_theta[i, t_i]
            pl.BlockSpec((Bt, 1), lambda b, k: (b, 0)),          # phi_theta[i, t_i]
            pl.BlockSpec((Bt, Ct), lambda b, k: (b, k)),         # cos_theta (streamed)
        ],
        out_specs=pl.BlockSpec((Bt, 1), lambda b, k: (b, 0)),
        scratch_shapes=[pltpu.VMEM((Bt, 1), jnp.float32)] * 2,   # running max / exp-sum
        compiler_params=pltpu.CompilerParams(
            dimension_semantics=("parallel", "arbitrary"),
            vmem_limit_bytes=vmem_limit),
        cost_estimate=cost,
    )(scale, cos_t, phi_t, cos_theta)

    return jnp.sum(per_row) / B


def angle_loss(cos_theta, phi_theta, target, *, base=1000.0, gamma=1.5e-05,
               power=5, lambda_min=5.0, latest_iter=0,
               block_b=256, block_c=8192):
    """Pallas-backed AngleLoss.forward. Returns (loss, new_iter).

    cos_theta / phi_theta: (B, C), f32 or bf16 (kept in their HBM dtype; widened to f32
    inside the kernel).  target: (B,) int class indices.
    """
    it = latest_iter + 1
    lamb = max(lambda_min, base / (1.0 + gamma * it) ** power)
    scale = jnp.full((1, 1), 1.0 / (1.0 + lamb), dtype=jnp.float32)  # data, not trace const

    B, _ = cos_theta.shape
    target2d = target.reshape(B, 1).astype(jnp.int32)
    # TODO(synk): like the PyTorch module, out-of-range targets are not checked; JAX's
    # take_along_axis clamps them, whereas torch scatter_/gather would be UB.
    loss = _angle_loss_pallas(scale, cos_theta, phi_theta, target2d,
                              block_b=block_b, block_c=block_c)
    return loss, it


def _reference_angle_loss(cos_theta, phi_theta, target, *, base=1000.0,
                          gamma=1.5e-05, power=5, lambda_min=5.0, latest_iter=0):
    """Pure-JAX reference mirroring the PyTorch forward."""
    it = latest_iter + 1
    lamb = max(lambda_min, base / (1.0 + gamma * it) ** power)
    B, C = cos_theta.shape
    one_hot = jax.nn.one_hot(target, C, dtype=jnp.float32)
    cos = cos_theta.astype(jnp.float32)
    phi = phi_theta.astype(jnp.float32)
    output = cos - one_hot * cos / (1.0 + lamb) + one_hot * phi / (1.0 + lamb)
    logpt = jax.nn.log_softmax(output, axis=1)
    picked = jnp.sum(logpt * one_hot, axis=1)
    return -jnp.mean(picked)


if __name__ == "__main__":
    key = jax.random.PRNGKey(0)
    k1, k2, k3 = jax.random.split(key, 3)

    # Test 1: small shapes (single tile), f32.
    B, C = 8, 16
    cos_theta = jax.random.uniform(k1, (B, C), jnp.float32, minval=-1.0, maxval=1.0)
    phi_theta = jax.random.uniform(k2, (B, C), jnp.float32, minval=-2.0, maxval=1.0)
    target = jax.random.randint(k3, (B,), 0, C, dtype=jnp.int32)

    loss, new_it = angle_loss(cos_theta, phi_theta, target, latest_iter=0)
    loss = jax.block_until_ready(loss)
    ref = _reference_angle_loss(cos_theta, phi_theta, target, latest_iter=0)
    assert jnp.allclose(loss, ref, atol=1e-5, rtol=1e-5), (loss, ref)

    # Test 2: exercises the tiled online-LSE reduction with partial tiles on both the
    # batch and class axes (still small shapes).
    B2, C2 = 20, 300
    k4, k5, k6 = jax.random.split(jax.random.PRNGKey(1), 3)
    cos2 = jax.random.uniform(k4, (B2, C2), jnp.float32, minval=-1.0, maxval=1.0)
    phi2 = jax.random.uniform(k5, (B2, C2), jnp.float32, minval=-2.0, maxval=1.0)
    tgt2 = jax.random.randint(k6, (B2,), 0, C2, dtype=jnp.int32)

    loss2, _ = angle_loss(cos2, phi2, tgt2, latest_iter=3, block_b=8, block_c=128)
    loss2 = jax.block_until_ready(loss2)
    ref2 = _reference_angle_loss(cos2, phi2, tgt2, latest_iter=3)
    assert jnp.allclose(loss2, ref2, atol=1e-4, rtol=1e-4), (loss2, ref2)

    # Test 3: bf16 inputs (halved streamed bytes), lamb at lambda_min (strong margin),
    # 2 batch tiles (partial last) x 2 class tiles.
    B3, C3 = 24, 256
    k7, k8, k9 = jax.random.split(jax.random.PRNGKey(2), 3)
    cos3 = jax.random.uniform(k7, (B3, C3), jnp.float32, minval=-1.0, maxval=1.0
                              ).astype(jnp.bfloat16)
    phi3 = jax.random.uniform(k8, (B3, C3), jnp.float32, minval=-2.0, maxval=1.0
                              ).astype(jnp.bfloat16)
    tgt3 = jax.random.randint(k9, (B3,), 0, C3, dtype=jnp.int32)

    loss3, _ = angle_loss(cos3, phi3, tgt3, latest_iter=2_000_000, block_c=128)
    loss3 = jax.block_until_ready(loss3)
    ref3 = _reference_angle_loss(cos3, phi3, tgt3, latest_iter=2_000_000)
    assert jnp.allclose(loss3, ref3, atol=1e-3, rtol=1e-3), (loss3, ref3)

    print("KERNEL_OK")
</pallas_src>

<mosaic_0001>
module attributes {stable_mosaic.version = 11 : i64} {
  func.func @_angle_loss_kernel(%arg0: i32, %arg1: i32, %arg2: memref<1x1xf32, #tpu.memory_space<smem>>, %arg3: memref<8x1xf32, #tpu.memory_space<vmem>>, %arg4: memref<8x1xf32, #tpu.memory_space<vmem>>, %arg5: memref<8x16xf32, #tpu.memory_space<vmem>>, %arg6: memref<8x1xf32, #tpu.memory_space<vmem>>, %arg7: memref<8x1xf32, #tpu.memory_space<vmem>>, %arg8: memref<8x1xf32, #tpu.memory_space<vmem>>) attributes {dimension_semantics = [#tpu.dimension_semantics<parallel>, #tpu.dimension_semantics<arbitrary>], iteration_bounds = array<i64: 1, 1>, scalar_prefetch = 0 : i64, scratch_operands = 2 : i64, tpu.core_type = #tpu.core_type<tc>, window_params = [{transform_indices = @transform_0, window_bounds = array<i64: 1, 1>}, {transform_indices = @transform_1, window_bounds = array<i64: 8, 1>}, {transform_indices = @transform_2, window_bounds = array<i64: 8, 1>}, {transform_indices = @transform_3, window_bounds = array<i64: 8, 16>}, {transform_indices = @transform_4, window_bounds = array<i64: 8, 1>}]} {
    %c0_i32 = arith.constant 0 : i32
    %0 = arith.cmpi eq, %arg1, %c0_i32 : i32
    %1 = arith.extui %0 : i1 to i32
    %c0_i32_0 = arith.constant 0 : i32
    %2 = arith.cmpi ne, %1, %c0_i32_0 : i32
    scf.if %2 {
      %cst_13 = arith.constant 0xFF800000 : f32
      %23 = vector.broadcast %cst_13 : f32 to vector<8x1xf32>
      %c0_14 = arith.constant 0 : index
      %c0_15 = arith.constant 0 : index
      %24 = vector.load %arg7[%c0_14, %c0_15] : memref<8x1xf32, #tpu.memory_space<vmem>>, vector<8x1xf32>
      tpu.vector_store %arg7[%c0_14, %c0_15], %23 {strides = array<i32>} : memref<8x1xf32, #tpu.memory_space<vmem>>, vector<8x1xf32>,
      %cst_16 = arith.constant 0.000000e+00 : f32
      %25 = vector.broadcast %cst_16 : f32 to vector<8x1xf32>
      %c0_17 = arith.constant 0 : index
      %c0_18 = arith.constant 0 : index
      %26 = vector.load %arg8[%c0_17, %c0_18] : memref<8x1xf32, #tpu.memory_space<vmem>>, vector<8x1xf32>
      tpu.vector_store %arg8[%c0_17, %c0_18], %25 {strides = array<i32>} : memref<8x1xf32, #tpu.memory_space<vmem>>, vector<8x1xf32>,
    } else {
    }
    %c0 = arith.constant 0 : index
    %c0_1 = arith.constant 0 : index
    %3 = vector.load %arg5[%c0, %c0_1] : memref<8x16xf32, #tpu.memory_space<vmem>>, vector<8x16xf32>
    %c0_2 = arith.constant 0 : index
    %c0_3 = arith.constant 0 : index
    %4 = vector.load %arg7[%c0_2, %c0_3] : memref<8x1xf32, #tpu.memory_space<vmem>>, vector<8x1xf32>
    %cst = arith.constant dense<0xFF800000> : vector<8xf32>
    %5 = vector.multi_reduction <maximumf>, %3, %cst [1] : vector<8x16xf32> to vector<8xf32>
    %6 = vector.shape_cast %5 : vector<8xf32> to vector<8x1xf32>
    %7 = arith.maximumf %4, %6 : vector<8x1xf32>
    %8 = arith.subf %4, %7 : vector<8x1xf32>
    %9 = math.exp %8 : vector<8x1xf32>
    %c0_4 = arith.constant 0 : index
    %c0_5 = arith.constant 0 : index
    %10 = vector.load %arg8[%c0_4, %c0_5] : memref<8x1xf32, #tpu.memory_space<vmem>>, vector<8x1xf32>
    %11 = arith.mulf %9, %10 : vector<8x1xf32>
    %12 = vector.broadcast %7 : vector<8x1xf32> to vector<8x16xf32>
    %13 = arith.subf %3, %12 : vector<8x16xf32>
    %14 = math.exp %13 : vector<8x16xf32>
    %cst_6 = arith.constant dense<0.000000e+00> : vector<8xf32>
    %15 = vector.multi_reduction <add>, %14, %cst_6 [1] : vector<8x16xf32> to vector<8xf32>
    %16 = vector.shape_cast %15 : vector<8xf32> to vector<8x1xf32>
    %17 = arith.addf %11, %16 : vector<8x1xf32>
    %c0_7 = arith.constant 0 : index
    %c0_8 = arith.constant 0 : index
    %18 = vector.load %arg8[%c0_7, %c0_8] : memref<8x1xf32, #tpu.memory_space<vmem>>, vector<8x1xf32>
    tpu.vector_store %arg8[%c0_7, %c0_8], %17 {strides = array<i32>} : memref<8x1xf32, #tpu.memory_space<vmem>>, vector<8x1xf32>,
    %c0_9 = arith.constant 0 : index
    %c0_10 = arith.constant 0 : index
    %19 = vector.load %arg7[%c0_9, %c0_10] : memref<8x1xf32, #tpu.memory_space<vmem>>, vector<8x1xf32>
    tpu.vector_store %arg7[%c0_9, %c0_10], %7 {strides = array<i32>} : memref<8x1xf32, #tpu.memory_space<vmem>>, vector<8x1xf32>,
    %c0_i32_11 = arith.constant 0 : i32
    %20 = arith.cmpi eq, %arg1, %c0_i32_11 : i32
    %21 = arith.extui %20 : i1 to i32
    %c0_i32_12 = arith.constant 0 : i32
    %22 = arith.cmpi ne, %21, %c0_i32_12 : i32
    scf.if %22 {
      %c0_13 = arith.constant 0 : index
      %c0_14 = arith.constant 0 : index
      %23 = memref.load %arg2[%c0_13, %c0_14] : memref<1x1xf32, #tpu.memory_space<smem>>
      %c0_15 = arith.constant 0 : index
      %c0_16 = arith.constant 0 : index
      %24 = vector.load %arg3[%c0_15, %c0_16] : memref<8x1xf32, #tpu.memory_space<vmem>>, vector<8x1xf32>
      %c0_17 = arith.constant 0 : index
      %c0_18 = arith.constant 0 : index
      %25 = vector.load %arg4[%c0_17, %c0_18] : memref<8x1xf32, #tpu.memory_space<vmem>>, vector<8x1xf32>
      %26 = arith.subf %25, %24 : vector<8x1xf32>
      %27 = vector.broadcast %23 : f32 to vector<8x1xf32>
      %28 = arith.mulf %27, %26 : vector<8x1xf32>
      %29 = arith.addf %24, %28 : vector<8x1xf32>
      %c0_19 = arith.constant 0 : index
      %c0_20 = arith.constant 0 : index
      %30 = vector.load %arg7[%c0_19, %c0_20] : memref<8x1xf32, #tpu.memory_space<vmem>>, vector<8x1xf32>
      %c0_21 = arith.constant 0 : index
      %c0_22 = arith.constant 0 : index
      %31 = vector.load %arg8[%c0_21, %c0_22] : memref<8x1xf32, #tpu.memory_space<vmem>>, vector<8x1xf32>
      %32 = arith.subf %24, %30 : vector<8x1xf32>
      %33 = math.exp %32 : vector<8x1xf32>
      %34 = arith.subf %31, %33 : vector<8x1xf32>
      %35 = arith.subf %29, %30 : vector<8x1xf32>
      %36 = math.exp %35 : vector<8x1xf32>
      %37 = arith.addf %34, %36 : vector<8x1xf32>
      %cst_23 = arith.constant 1.17549435E-38 : f32
      %38 = vector.broadcast %cst_23 : f32 to vector<8x1xf32>
      %39 = arith.maximumf %37, %38 : vector<8x1xf32>
      %40 = math.log %39 : vector<8x1xf32>
      %41 = arith.addf %30, %40 : vector<8x1xf32>
      %42 = arith.subf %41, %29 : vector<8x1xf32>
      %c0_24 = arith.constant 0 : index
      %c0_25 = arith.constant 0 : index
      %43 = vector.load %arg6[%c0_24, %c0_25] : memref<8x1xf32, #tpu.memory_space<vmem>>, vector<8x1xf32>
      tpu.vector_store %arg6[%c0_24, %c0_25], %42 {strides = array<i32>} : memref<8x1xf32, #tpu.memory_space<vmem>>, vector<8x1xf32>,
    } else {
    }
    return
  }
  func.func @transform_0(%arg0: i32, %arg1: i32) -> (i32, i32) {
    %c0_i32 = arith.constant 0 : i32
    %c0_i32_0 = arith.constant 0 : i32
    %c0_i32_1 = arith.constant 0 : i32
    return %c0_i32, %c0_i32_0 : i32, i32
  }
  func.func @transform_1(%arg0: i32, %arg1: i32) -> (i32, i32) {
    %c0_i32 = arith.constant 0 : i32
    %c0_i32_0 = arith.constant 0 : i32
    return %arg0, %c0_i32 : i32, i32
  }
  func.func @transform_2(%arg0: i32, %arg1: i32) -> (i32, i32) {
    %c0_i32 = arith.constant 0 : i32
    %c0_i32_0 = arith.constant 0 : i32
    return %arg0, %c0_i32 : i32, i32
  }
  func.func @transform_3(%arg0: i32, %arg1: i32) -> (i32, i32) {
    %c0_i32 = arith.constant 0 : i32
    return %arg0, %arg1 : i32, i32
  }
  func.func @transform_4(%arg0: i32, %arg1: i32) -> (i32, i32) {
    %c0_i32 = arith.constant 0 : i32
    %c0_i32_0 = arith.constant 0 : i32
    return %arg0, %c0_i32 : i32, i32
  }
}

</mosaic_0001>

<llo_original>
// kernel: _angle_loss_pallas.1
$region0: #{_angle_loss_pallas.1}
  #allocation0 [shape = 'u32[]', space=smem, size = 0x4, offset = 0x4, fixed_abs, tag = 'smem constant byte address 0x4 - core index']
  #allocation1 [shape = 'u32[144,128]{1,0:T(1,128)}', space=vmem, size = 0x12000, scoped, tag = 'internal scratch']
  #allocation2 [shape = 'f32[8,1]{1,0:T(8,128)}', space=vmem, size = 0x1000, scoped, tag = 'scratch operand']
  #allocation3 [shape = 'f32[8,1]{1,0:T(8,128)}', space=vmem, size = 0x1000, scoped, tag = 'scratch operand']
  #allocation4 [shape = 'f32[1,1]{1,0:T(1,128)S(6)}', space=smem, size = 0x200, scoped, tag = 'scoped memory for _angle_loss_pallas.1']
  %s0 = inlined_call_operand.<no memory space> [shape: f32[1,1], index: 0, kind: input, shape index: {}]
  %s1 = inlined_call_operand.vmem [shape: f32[8,1], index: 1, kind: input, shape index: {}]
  %s2 = inlined_call_operand.vmem [shape: f32[8,1], index: 2, kind: input, shape index: {}]
  %s3 = inlined_call_operand.vmem [shape: f32[8,16], index: 3, kind: input, shape index: {}]
  %s4 = inlined_call_operand.vmem [shape: f32[8,1], index: 4, kind: output, shape index: {}]
  %s5 = sld [smem:[#allocation0]]
  $region34: #{_angle_loss_pallas.1} parent=0
    _
  %s7 = ssub.s32 1, %s5
  %s8 = scalar_select 0, %s7, %s5
  %9 = sst [smem:[#allocation4]] %s0
  // Predicated region
  $region2: #{_angle_loss_pallas.1} parent=0 // pred_check
    _
  $region3: #{_angle_loss_pallas.1} parent=0 // pred_check_branch
    %11 = sbr.rel (0) target = $region5
  $region4: #{_angle_loss_pallas.1} parent=0 // pred_region
    _
  $region5: #{_angle_loss_pallas.1} parent=0 // pred_fallthru
    _
  // Predicated region
  $region6: #{_angle_loss_pallas.1} parent=0 // pred_check
    _
  $region7: #{_angle_loss_pallas.1} parent=0 // pred_check_branch
    %13 = sbr.rel (0) target = $region9
  $region8: #{_angle_loss_pallas.1} parent=0 // pred_region
    _
  $region9: #{_angle_loss_pallas.1} parent=0 // pred_fallthru
    _
  // Predicated region
  $region10: #{_angle_loss_pallas.1} parent=0 // pred_check
    _
  $region11: #{_angle_loss_pallas.1} parent=0 // pred_check_branch
    %15 = sbr.rel (0) target = $region13
  $region12: #{_angle_loss_pallas.1} parent=0 // pred_region
    _
  $region13: #{_angle_loss_pallas.1} parent=0 // pred_fallthru
    _
  // Predicated region
  $region14: #{_angle_loss_pallas.1} parent=0 // pred_check
    _
  $region15: #{_angle_loss_pallas.1} parent=0 // pred_check_branch
    %17 = sbr.rel (0) target = $region17
  $region16: #{_angle_loss_pallas.1} parent=0 // pred_region
    _
  $region17: #{_angle_loss_pallas.1} parent=0 // pred_fallthru
    _
  %p18 = scmp.eq.s32.totalorder 0, 0
  // Predicated region
  $region18: #{_angle_loss_pallas.1} parent=0 // pred_check
    %p19 = pneg %p18
  $region19: #{_angle_loss_pallas.1} parent=0 // pred_check_branch
    %21 = sbr.rel (%p19) target = $region21
  $region20: #{_angle_loss_pallas.1} parent=0 // pred_region
    %vm22 = vcmask 7168
    %23 = vst.msk [vmem:[#allocation2] sm:$0xff] %vm22, -inf
    %24 = vst.msk [vmem:[#allocation3] sm:$0xff] %vm22, 0.0
  $region21: #{_angle_loss_pallas.1} parent=0 // pred_fallthru
    _
  %v25 = vld [vmem:[%s3] sm:$0xff]
  %v26 = vld [vmem:[#allocation2] sm:$0xff]
  %vm27 = vcmask 130048
  %v28 = vsel %vm27, %v25, -inf
  %29 = vmax.xlane.f32.xlu0 %v28
  %v30 = vpop.xlane.xlu0 %29
  %v31 = vmax.f32 %v26, %v30
  %v32 = vsub.f32 %v26, %v31
  %v33 = vmul.f32 %v32, 1.442695
  %v34 = vpow.pop %v33
  %v35 = vld [vmem:[#allocation3] sm:$0xff]
  %v36 = vmul.f32 %v34, %v35
  %38 = vset.pattern.permute.xlu0 0
  %39 = vperm.xlu0 %38, %v31
  %v40 = vpop.permute.xlu0 %39
  %v42 = vsub.f32 %v25, %v40
  %v43 = vmul.f32 %v42, 1.442695
  %v44 = vpow.pop %v43
  %v45 = vsel %vm27, %v44, 0.0
  %46 = vadd.xlane.f32.xlu0 %v45
  %v47 = vpop.xlane.xlu0 %46
  %v48 = vadd.f32 %v36, %v47
  %vm49 = vcmask 7168
  %50 = vst.msk [vmem:[#allocation3] sm:$0xff] %vm49, %v48
  %51 = vst.msk [vmem:[#allocation2] sm:$0xff] %vm49, %v31
  // Predicated region
  $region22: #{_angle_loss_pallas.1} parent=0 // pred_check
    %p52 = pneg %p18
  $region23: #{_angle_loss_pallas.1} parent=0 // pred_check_branch
    %54 = sbr.rel (%p52) target = $region25
  $region24: #{_angle_loss_pallas.1} parent=0 // pred_region
    %s55 = sld [smem:[#allocation4]]
    %v56 = vld [vmem:[%s1] sm:$0xff]
    %v57 = vld [vmem:[%s2] sm:$0xff]
    %v58 = vsub.f32 %v57, %v56
    %v59 = vstv %s55
    %v60 = vmul.f32 %v59, %v58
    %v61 = vadd.f32 %v56, %v60
    %v62 = vld [vmem:[#allocation2] sm:$0xff]
    %v63 = vld [vmem:[#allocation3] sm:$0xff]
    %v64 = vsub.f32 %v56, %v62
    %v65 = vmul.f32 %v64, 1.442695
    %v66 = vpow.pop %v65
    %v67 = vsub.f32 %v63, %v66
    %v68 = vsub.f32 %v61, %v62
    %v69 = vmul.f32 %v68, 1.442695
    %v70 = vpow.pop %v69
    %v71 = vadd.f32 %v67, %v70
    %v72 = vmax.f32 %v71, 1.1754944e-38
    %v73 = vlog2.pop %v72
    %v74 = vmul.f32 %v73, 0.6931472
    %v75 = vadd.f32 %v62, %v74
    %v76 = vsub.f32 %v75, %v61
    %77 = vst.msk [vmem:[%s4] sm:$0xff] %vm49, %v76
  $region25: #{_angle_loss_pallas.1} parent=0 // pred_fallthru
    _
  // Predicated region
  $region26: #{_angle_loss_pallas.1} parent=0 // pred_check
    _
  $region27: #{_angle_loss_pallas.1} parent=0 // pred_check_branch
    %79 = sbr.rel (0) target = $region29
  $region28: #{_angle_loss_pallas.1} parent=0 // pred_region
    _
  $region29: #{_angle_loss_pallas.1} parent=0 // pred_fallthru
    _
  // Predicated region
  $region30: #{_angle_loss_pallas.1} parent=0 // pred_check
    _
  $region31: #{_angle_loss_pallas.1} parent=0 // pred_check_branch
    %81 = sbr.rel (0) target = $region33
  $region32: #{_angle_loss_pallas.1} parent=0 // pred_region
    _
  $region33: #{_angle_loss_pallas.1} parent=0 // pred_fallthru
    _

</llo_original>
